<compile_context>
chip_gen: v7x
topology: tpu7x:2x2x1
jax: 0.10.0
libtpu: 0.0.40
codegen_flags: <defaults>
</compile_context>

<pallas_src>
import jax
import jax.numpy as jnp
from jax.experimental import pallas as pl
from jax.experimental.pallas import tpu as pltpu


def _round_up(x, m):
    return (x + m - 1) // m * m


def _largest_divisor_tile(total, preferred, align):
    """Largest multiple of `align` that divides `total` and is <= preferred."""
    best = None
    t = align
    while t <= min(total, preferred):
        if total % t == 0:
            best = t
        t += align
    return best


def _vmem_capacity_bytes():
    try:
        return int(pltpu.get_tpu_info().vmem_capacity_bytes)
    except Exception:
        return 64 << 20  # v7x per-TC VMEM: conservative lower bound everywhere


def _linear_kernel(x_ref, w_ref, b_ref, o_ref):
    # x_ref: (tm, K) bf16   w_ref: (K, tn) bf16   b_ref: (1, tn) f32
    # o_ref: (tm, tn) out_dtype
    acc = jnp.dot(x_ref[...], w_ref[...], preferred_element_type=jnp.float32)
    o_ref[...] = (acc + b_ref[...]).astype(o_ref.dtype)


def generation_head(x, weight, bias, *, tm=256, tn=1024,
                    compute_dtype=jnp.bfloat16, out_dtype=None):
    """logits = x @ weight + bias  (PyTorch nn.Linear forward).

    x:      [batch, seq, hidden]
    weight: [hidden, vocab]  (transpose of PyTorch nn.Linear.weight; convert to
            `compute_dtype` ONCE at init to avoid a per-call full-HBM cast)
    bias:   [vocab]
    returns [batch, seq, vocab]  (set out_dtype=jnp.bfloat16 to halve the
            logits writeback if downstream softmax/sampling tolerates it)
    """
    batch, seq, hidden = x.shape
    k_dim, vocab = weight.shape
    assert k_dim == hidden
    out_dtype = out_dtype or x.dtype

    m = batch * seq
    in_bytes = jnp.dtype(compute_dtype).itemsize
    out_bytes = jnp.dtype(out_dtype).itemsize

    # ---- tile selection under the per-device VMEM budget -------------------
    capacity = _vmem_capacity_bytes()
    budget = capacity - (10 << 20)          # Mosaic scratch headroom

    tm_eff = min(tm, _round_up(m, 16))      # 16 = bf16 sublane pack
    v_aligned = _round_up(vocab, 128)
    tn_pref = max(128, (min(tn, v_aligned) // 128) * 128)

    def footprint(tm_, tn_):
        # double-buffered x / W / bias inputs + double-buffered output tile
        return (2 * (tm_ * hidden + hidden * tn_) * in_bytes
                + 2 * tn_ * 4
                + 2 * tm_ * tn_ * out_bytes)

    while footprint(tm_eff, tn_pref) > budget and tn_pref > 256:
        tn_pref = max(256, tn_pref // 2)
    while footprint(tm_eff, tn_pref) > budget and tm_eff > 64:
        tm_eff = max(64, tm_eff // 2)
    # TODO(synk): for extreme hidden sizes where even (64, 256) tiles exceed the
    # budget, add a K grid axis ("arbitrary") with an f32 VMEM accumulator so
    # the W tile no longer scales with the full hidden dim.

    # Prefer a tn that divides the 128-aligned vocab so W never needs padding.
    tn_div = _largest_divisor_tile(v_aligned, tn_pref, 128)
    if tn_div is not None and tn_div >= min(256, v_aligned):
        tn_eff = tn_div
        v_pad = v_aligned
    else:
        tn_eff = tn_pref
        v_pad = _round_up(vocab, tn_eff)
    m_pad = _round_up(m, tm_eff)

    # ---- operand prep (no full-W copy in the common case) ------------------
    x2d = x.reshape(m, hidden)
    if x2d.dtype != compute_dtype:
        x2d = x2d.astype(compute_dtype)
    w = weight
    if w.dtype != compute_dtype:
        # Avoid this per-call cast by storing the weight in compute_dtype at init.
        w = w.astype(compute_dtype)
    b2d = bias.astype(jnp.float32).reshape(1, vocab)

    if m_pad != m:
        x2d = jnp.pad(x2d, ((0, m_pad - m), (0, 0)))
    if v_pad != vocab:
        # Rare (vocab not a multiple of 128): pad at most tn_eff-1 columns.
        w = jnp.pad(w, ((0, 0), (0, v_pad - vocab)))
        b2d = jnp.pad(b2d, ((0, 0), (0, v_pad - vocab)))

    n_vocab_tiles = v_pad // tn_eff
    n_m_tiles = m_pad // tm_eff
    grid = (n_vocab_tiles, n_m_tiles)       # vocab outer, m inner -> W streamed once

    vmem_limit = int(min(capacity, max(footprint(tm_eff, tn_eff) + (8 << 20),
                                       32 << 20)))

    cost = pl.CostEstimate(
        flops=2 * m_pad * hidden * v_pad,
        transcendentals=0,
        bytes_accessed=int(
            hidden * v_pad * in_bytes                      # W streamed once
            + n_vocab_tiles * m_pad * hidden * in_bytes    # x re-streamed per vocab tile
            + v_pad * 4                                    # bias
            + m_pad * v_pad * out_bytes                    # logits writeback
        ),
    )

    out2d = pl.pallas_call(
        _linear_kernel,
        out_shape=jax.ShapeDtypeStruct((m_pad, v_pad), out_dtype),
        grid_spec=pltpu.PrefetchScalarGridSpec(
            num_scalar_prefetch=0,
            grid=grid,
            in_specs=[
                pl.BlockSpec((tm_eff, hidden), lambda j, i: (i, 0)),   # x tile
                pl.BlockSpec((hidden, tn_eff), lambda j, i: (0, j)),   # W tile (outer axis only)
                pl.BlockSpec((1, tn_eff), lambda j, i: (0, j)),        # bias tile
            ],
            out_specs=pl.BlockSpec((tm_eff, tn_eff), lambda j, i: (i, j)),
        ),
        compiler_params=pltpu.CompilerParams(
            dimension_semantics=("parallel", "parallel"),
            vmem_limit_bytes=vmem_limit,
        ),
        cost_estimate=cost,
    )(x2d, w, b2d)

    out2d = out2d[:m, :vocab]
    return out2d.reshape(batch, seq, vocab)


if __name__ == "__main__":
    # Small shapes consistent with the module: [batch, seq, hidden] -> [batch, seq, vocab]
    batch, seq, hidden, vocab = 2, 8, 32, 256

    key = jax.random.PRNGKey(0)
    kx, kw, kb = jax.random.split(key, 3)

    x = jax.random.normal(kx, (batch, seq, hidden), dtype=jnp.float32)
    # PyTorch nn.Linear layout: weight [vocab, hidden], bias [vocab]
    w_torch_layout = jax.random.normal(kw, (vocab, hidden), dtype=jnp.float32) * 0.02
    bias = jax.random.normal(kb, (vocab,), dtype=jnp.float32) * 0.02

    # Init-time (one-off) conversion to the streaming dtype: [hidden, vocab], bf16.
    weight = w_torch_layout.T.astype(jnp.bfloat16)

    logits = generation_head(x, weight, bias)
    jax.block_until_ready(logits)

    # Reference with the same bf16 compute / f32 accumulate path.
    ref = (
        jnp.dot(
            x.reshape(batch * seq, hidden).astype(jnp.bfloat16),
            weight,
            preferred_element_type=jnp.float32,
        )
        + bias
    ).astype(x.dtype).reshape(batch, seq, vocab)

    assert logits.shape == (batch, seq, vocab)
    assert jnp.allclose(logits, ref, atol=2e-2, rtol=2e-2)
    # Sanity vs. full-f32 math (bf16 rounding only).
    ref_f32 = x @ w_torch_layout.T + bias
    assert jnp.allclose(logits, ref_f32, atol=5e-2, rtol=5e-2)

    print("KERNEL_OK")
</pallas_src>

<mosaic_0001>
module attributes {stable_mosaic.version = 11 : i64} {
  func.func @_linear_kernel(%arg0: i32, %arg1: i32, %arg2: memref<16x32xbf16, #tpu.memory_space<vmem>>, %arg3: memref<32x256xbf16, #tpu.memory_space<vmem>>, %arg4: memref<1x256xf32, #tpu.memory_space<vmem>>, %arg5: memref<16x256xf32, #tpu.memory_space<vmem>>) attributes {dimension_semantics = [#tpu.dimension_semantics<parallel>, #tpu.dimension_semantics<parallel>], iteration_bounds = array<i64: 1, 1>, scalar_prefetch = 0 : i64, scratch_operands = 0 : i64, tpu.core_type = #tpu.core_type<tc>, window_params = [{transform_indices = @transform_0, window_bounds = array<i64: 16, 32>}, {transform_indices = @transform_1, window_bounds = array<i64: 32, 256>}, {transform_indices = @transform_2, window_bounds = array<i64: 1, 256>}, {transform_indices = @transform_3, window_bounds = array<i64: 16, 256>}]} {
    %c0 = arith.constant 0 : index
    %c0_0 = arith.constant 0 : index
    %0 = vector.load %arg2[%c0, %c0_0] : memref<16x32xbf16, #tpu.memory_space<vmem>>, vector<16x32xbf16>
    %c0_1 = arith.constant 0 : index
    %c0_2 = arith.constant 0 : index
    %1 = vector.load %arg3[%c0_1, %c0_2] : memref<32x256xbf16, #tpu.memory_space<vmem>>, vector<32x256xbf16>
    %cst = arith.constant dense<0.000000e+00> : vector<16x256xf32>
    %2 = tpu.matmul %0, %1, %cst {dimension_numbers = #tpu.dot_dimension_numbers<[1], [0], [0], [1], [0, 0, 1, 1], [], []>} : vector<16x32xbf16>, vector<32x256xbf16>, vector<16x256xf32> -> vector<16x256xf32>
    %c0_3 = arith.constant 0 : index
    %c0_4 = arith.constant 0 : index
    %3 = vector.load %arg4[%c0_3, %c0_4] : memref<1x256xf32, #tpu.memory_space<vmem>>, vector<1x256xf32>
    %4 = vector.broadcast %3 : vector<1x256xf32> to vector<16x256xf32>
    %5 = arith.addf %2, %4 : vector<16x256xf32>
    %c0_5 = arith.constant 0 : index
    %c0_6 = arith.constant 0 : index
    %6 = vector.load %arg5[%c0_5, %c0_6] : memref<16x256xf32, #tpu.memory_space<vmem>>, vector<16x256xf32>
    tpu.vector_store %arg5[%c0_5, %c0_6], %5 {strides = array<i32>} : memref<16x256xf32, #tpu.memory_space<vmem>>, vector<16x256xf32>,
    return
  }
  func.func @transform_0(%arg0: i32, %arg1: i32) -> (i32, i32) {
    %c0_i32 = arith.constant 0 : i32
    %c0_i32_0 = arith.constant 0 : i32
    return %arg1, %c0_i32 : i32, i32
  }
  func.func @transform_1(%arg0: i32, %arg1: i32) -> (i32, i32) {
    %c0_i32 = arith.constant 0 : i32
    %c0_i32_0 = arith.constant 0 : i32
    return %c0_i32, %arg0 : i32, i32
  }
  func.func @transform_2(%arg0: i32, %arg1: i32) -> (i32, i32) {
    %c0_i32 = arith.constant 0 : i32
    %c0_i32_0 = arith.constant 0 : i32
    return %c0_i32, %arg0 : i32, i32
  }
  func.func @transform_3(%arg0: i32, %arg1: i32) -> (i32, i32) {
    %c0_i32 = arith.constant 0 : i32
    return %arg1, %arg0 : i32, i32
  }
}

</mosaic_0001>

<llo_original>
// kernel: tpu_custom_call.1
$region0: #{tpu_custom_call.1}
  #allocation0 [shape = 'u32[]', space=smem, size = 0x4, offset = 0x4, fixed_abs, tag = 'smem constant byte address 0x4 - core index']
  #allocation1 [shape = 'u32[144,128]{1,0:T(1,128)}', space=vmem, size = 0x12000, scoped, tag = 'internal scratch']
  %s0 = inlined_call_operand.hbm [shape: bf16[16,32], index: 0, kind: input, shape index: {}]
  %s1 = inlined_call_operand.hbm [shape: bf16[32,256], index: 1, kind: input, shape index: {}]
  %s2 = inlined_call_operand.vmem [shape: f32[1,256], index: 2, kind: input, shape index: {}]
  %s3 = inlined_call_operand.hbm [shape: f32[16,256], index: 3, kind: output, shape index: {}]
  %s4 = sld [smem:[#allocation0]]
  $region30: #{tpu_custom_call.1} parent=0
    _
  %s6 = ssub.s32 1, %s4
  %s7 = scalar_select 0, %s6, %s4
  $region1: #{tpu_custom_call.1} parent=0
    #allocation2 [shape = 'u8[4096]{0}', space=vmem, size = 0x1000, scoped, tag = 'input window, operand 0, single buffered']
    #allocation3 [shape = 's32[1]{0}', space=sflag, size = 0x4, scoped, tag = 'scoped memory for tpu_custom_call.1']
    #allocation4 [shape = 's32[1]{0}', space=sflag, size = 0x4, scoped, tag = 'scoped memory for tpu_custom_call.1']
    #allocation5 [shape = 'u8[16384]{0}', space=vmem, size = 0x4000, scoped, tag = 'input window, operand 1, single buffered']
    #allocation6 [shape = 's32[1]{0}', space=sflag, size = 0x4, scoped, tag = 'scoped memory for tpu_custom_call.1']
    #allocation7 [shape = 'u8[16384]{0}', space=vmem, size = 0x4000, scoped, tag = 'output window, operand 0, single buffered']
    %8 = vsyncpa [#allocation3], 0
    %9 = vsyncpa [#allocation6], 0
    %10 = vsyncpa [#allocation4], 0
    // Predicated region
    $region2: #{tpu_custom_call.1} parent=1 // pred_check
      _
    $region3: #{tpu_custom_call.1} parent=1 // pred_check_branch
      %12 = sbr.rel (0) target = $region5
    $region4: #{tpu_custom_call.1} parent=1 // pred_region
      %s14 = ssub.s32 128, 128
      %15 = vsyncadd [#allocation3], %s14
      %s16 = sshll.u32 [#allocation2], 4
      %s17 = int_to_ptr.vmem [resolvable:$true] %s16
      %22 = dma.hbm_to_vmem [thread:$0]  %s0, 128, %s17, [#allocation3], 64, 64, 4
    $region5: #{tpu_custom_call.1} parent=1 // pred_fallthru
      _
    // Predicated region
    $region6: #{tpu_custom_call.1} parent=1 // pred_check
      _
    $region7: #{tpu_custom_call.1} parent=1 // pred_check_branch
      %24 = sbr.rel (0) target = $region9
    $region8: #{tpu_custom_call.1} parent=1 // pred_region
      %s26 = ssub.s32 512, 512
      %27 = vsyncadd [#allocation6], %s26
      %s28 = sshll.u32 [#allocation5], 4
      %s29 = int_to_ptr.vmem [resolvable:$true] %s28
      %34 = dma.hbm_to_vmem [thread:$0]  %s1, 512, %s29, [#allocation6], 128, 128, 8
    $region9: #{tpu_custom_call.1} parent=1 // pred_fallthru
      _
    // Predicated region
    $region10: #{tpu_custom_call.1} parent=1 // pred_check
      _
    $region11: #{tpu_custom_call.1} parent=1 // pred_check_branch
      %36 = sbr.rel (0) target = $region13
    $region12: #{tpu_custom_call.1} parent=1 // pred_region
      _
    $region13: #{tpu_custom_call.1} parent=1 // pred_fallthru
      _
    // Predicated region
    $region14: #{tpu_custom_call.1} parent=1 // pred_check
      _
    $region15: #{tpu_custom_call.1} parent=1 // pred_check_branch
      %38 = sbr.rel (0) target = $region17
    $region16: #{tpu_custom_call.1} parent=1 // pred_region
      %39 = dma.done [#allocation3], 128
    $region17: #{tpu_custom_call.1} parent=1 // pred_fallthru
      _
    // Predicated region
    $region18: #{tpu_custom_call.1} parent=1 // pred_check
      _
    $region19: #{tpu_custom_call.1} parent=1 // pred_check_branch
      %41 = sbr.rel (0) target = $region21
    $region20: #{tpu_custom_call.1} parent=1 // pred_region
      %42 = dma.done [#allocation6], 512
    $region21: #{tpu_custom_call.1} parent=1 // pred_fallthru
      _
    %v44 = vld [vmem:[#allocation2] sm:$0xf]
    %v45 = vld [vmem:[#allocation2 + $0x4] sm:$0xf]
    %v46 = vld [vmem:[#allocation5] sm:$0xff]
    %v47 = vld [vmem:[#allocation5 + $0x8] sm:$0xff]
    %v48 = vld [vmem:[#allocation5 + $0x10] sm:$0xff]
    %v49 = vld [vmem:[#allocation5 + $0x18] sm:$0xff]
    %v50 = vld [vmem:[%s2] sm:$0x3]
    %v52 = vlaneseq
    %v53 = vshrl.u32 %v52, 7
    %v54 = vsub.s32 0, %v53
    %v55 = vrot.slane %v50, %v54
    %v56 = vlaneseq
    %v57 = vshrl.u32 %v56, 7
    %v58 = vsub.s32 1, %v57
    %v59 = vrot.slane %v50, %v58
    %v64 = vunpack.c.l.b16 %v44
    %v65 = vunpack.c.l.b16 %v45
    %v66 = vpack.c.b16 %v65, %v64
    %v71 = vunpack.c.l.b16 %v46
    %v72 = vunpack.c.h.b16 %v46
    %v73 = vunpack.c.l.b16 %v47
    %v74 = vunpack.c.h.b16 %v47
    %v75 = vunpack.c.l.b16 %v48
    %v76 = vunpack.c.h.b16 %v48
    %v77 = vunpack.c.l.b16 %v49
    %v78 = vunpack.c.h.b16 %v49
    %v79 = vpack.c.b16 %v73, %v71
    %v80 = vpack.c.b16 %v74, %v72
    %v81 = vpack.c.b16 %v77, %v75
    %v82 = vpack.c.b16 %v78, %v76
    %vm87 = vcmask 261120
    %v89 = vsel %vm87, %v66, 0
    %91 = vmatprep.subr.bf16.mxu0 %v80
    %92 = vmatpush1.bf16.msra.mxu0 %v79
    %93 = vmatprep.subr.bf16.mxu0 %v82
    %94 = vmatpush1.bf16.msra.mxu0 %v81
    %95 = vmatprep.subr.bf16.mxu0 0
    %96 = vmatpush1.bf16.msra.mxu0 0
    %97 = vmatprep.subr.bf16.mxu0 0
    %98 = vmatpush1.bf16.msra.mxu0 0
    %99 = vmatprep.subr.bf16.mxu0 0
    %100 = vmatpush1.bf16.msra.mxu0 0
    %101 = vmatprep.subr.bf16.mxu0 0
    %102 = vmatpush1.bf16.msra.mxu0 0
    %103 = vmatprep.subr.bf16.mxu0 0
    %104 = vmatpush1.bf16.msra.mxu0 0
    %105 = vmatprep.subr.bf16.mxu0 0
    %106 = vmatpush1.bf16.msra.mxu0 0
    %107 = vmatprep.subr.bf16.mxu0 0
    %108 = vmatpush1.bf16.msra.mxu0 0
    %109 = vmatprep.subr.bf16.mxu0 0
    %110 = vmatpush1.bf16.msra.mxu0 0
    %111 = vmatprep.subr.bf16.mxu0 0
    %112 = vmatpush1.bf16.msra.mxu0 0
    %113 = vmatprep.subr.bf16.mxu0 0
    %114 = vmatpush1.bf16.msra.mxu0 0
    %115 = vmatprep.subr.bf16.mxu0 0
    %116 = vmatpush1.bf16.msra.mxu0 0
    %117 = vmatprep.subr.bf16.mxu0 0
    %118 = vmatpush1.bf16.msra.mxu0 0
    %119 = vmatprep.subr.bf16.mxu0 0
    %120 = vmatpush1.bf16.msra.mxu0 0
    %121 = vmatprep.subr.bf16.mxu0 0
    %122 = vmatpush1.bf16.msra.mxu0 0
    %123 = vmatprep.mubr.bf16.mxu0 0
    %124 = vmatmul.mubr.bf16.gmra.mrb[0].mxu0 %v89
    %v125 = vpop.f32.mrb[0].mxu0
    %v126 = vadd.f32 %v55, %v125
    %v127 = vpop.f32.mrb[0].mxu0
    %v128 = vadd.f32 %v59, %v127
    %v129 = vpop.f32.mrb[0].mxu0
    %v130 = vadd.f32 %v55, %v129
    %v131 = vpop.f32.mrb[0].mxu0
    %v132 = vadd.f32 %v59, %v131
    %133 = vdwg.mxu0
    %134 = vst [vmem:[#allocation7] sm:$0xff] %v126
    %135 = vst [vmem:[#allocation7 + $0x8] sm:$0xff] %v128
    %136 = vst [vmem:[#allocation7 + $0x10] sm:$0xff] %v130
    %137 = vst [vmem:[#allocation7 + $0x18] sm:$0xff] %v132
    // Predicated region
    $region22: #{tpu_custom_call.1} parent=1 // pred_check
      _
    $region23: #{tpu_custom_call.1} parent=1 // pred_check_branch
      %139 = sbr.rel (0) target = $region25
    $region24: #{tpu_custom_call.1} parent=1 // pred_region
      %s141 = ssub.s32 512, 512
      %142 = vsyncadd [#allocation4], %s141
      %s143 = sshll.u32 [#allocation7], 4
      %s144 = int_to_ptr.vmem [resolvable:$true] %s143
      %149 = dma.vmem_to_hbm [thread:$0]  %s144, 512, %s3, [#allocation4], 256, 256, 16
    $region25: #{tpu_custom_call.1} parent=1 // pred_fallthru
      _
    // Predicated region
    $region26: #{tpu_custom_call.1} parent=1 // pred_check
      _
    $region27: #{tpu_custom_call.1} parent=1 // pred_check_branch
      %151 = sbr.rel (0) target = $region29
    $region28: #{tpu_custom_call.1} parent=1 // pred_region
      %152 = dma.done [#allocation4], 512
    $region29: #{tpu_custom_call.1} parent=1 // pred_fallthru
      _
    %153 = vsyncpa [#allocation3], 1
    %154 = vsyncpa [#allocation6], 1
    %155 = vsyncpa [#allocation4], 1

</llo_original>
